<compile_context>
chip_gen: v7x
topology: tpu7x:2x2x1
jax: 0.10.0
libtpu: 0.0.40
codegen_flags: <defaults>
</compile_context>

<pallas_src>
import jax
import jax.numpy as jnp
from jax import lax
from jax.experimental import pallas as pl
from jax.experimental.pallas import tpu as pltpu


def _round_up(x: int, m: int) -> int:
    return ((x + m - 1) // m) * m


def _vmem_capacity_bytes() -> int:
    try:
        return int(pltpu.get_tpu_info().vmem_capacity_bytes)
    except Exception:
        return 64 * 1024 * 1024  # conservative (v7x-sized) fallback


def _select_tiling(N, F_pad, C_pad, elem_bytes, tile_n, num_splits):
    """Pick a VMEM-sized batch tile, core split and vmem limit."""
    vmem_cap = _vmem_capacity_bytes()
    # ~96-100 MiB on 128 MiB parts (v5e/v6e), ~48 MiB on v7x's 64 MiB VMEM.
    vmem_limit = min(int(vmem_cap * 0.75), 100 * 1024 * 1024)
    sub = 16 if elem_bytes == 2 else 8  # sublane multiple for the batch tile

    if tile_n is None:
        budget = int(vmem_limit * 0.6)
        # Q (double-buffered) + resident f32 output block (x2 margin).
        fixed = 2 * F_pad * C_pad * elem_bytes + 2 * C_pad * F_pad * 4
        avail = max(budget - fixed, 2 * sub * F_pad * elem_bytes)
        tile_n = avail // (2 * F_pad * elem_bytes)  # x tile is double-buffered

    tile_n = int(max(sub, min(int(tile_n), 4096)))
    tile_n = _round_up(tile_n, sub)
    tile_n = min(tile_n, _round_up(N, sub))  # never exceed the (padded) batch

    if num_splits is None:
        # Feed both TensorCores (v7x megacore) only if each gets >=1 full tile.
        num_splits = 2 if N >= 2 * tile_n else 1
    return tile_n, int(num_splits), vmem_limit


def _oja_xtxq_kernel(x_ref, q_ref, out_ref):
    """Accumulates (x_tile @ Q)^T @ x_tile into the resident (C, F) out block."""
    i = pl.program_id(1)  # inner (reduction) grid axis over batch tiles

    @pl.when(i == 0)
    def _():
        out_ref[...] = jnp.zeros_like(out_ref)

    x = x_ref[...]                                                    # (tn, F)
    xq = jnp.dot(x, q_ref[...], preferred_element_type=jnp.float32)  # (tn, C)
    # Contract the batch axis of both operands directly: no explicit x.T
    # (no XLU transpose per grid step), f32 accumulation on the MXU.
    out_ref[...] += lax.dot_general(
        xq.astype(x.dtype), x,
        dimension_numbers=(((0,), (0,)), ((), ())),
        preferred_element_type=jnp.float32)                          # (C, F)


def oja_pre_qr_update(x: jax.Array, Q: jax.Array, eta: float, *,
                      tile_n: int | None = None,
                      num_splits: int | None = None,
                      compute_dtype=None) -> jax.Array:
    """Returns A = Q + eta * (x.T @ (x @ Q)); batch reduction runs in Pallas."""
    N, F = x.shape
    F2, C = Q.shape
    assert F == F2
    dt = jnp.dtype(compute_dtype) if compute_dtype is not None else x.dtype
    elem_bytes = dt.itemsize

    F_pad = _round_up(F, 128)
    C_pad = _round_up(C, 128)
    tile_n, num_splits, vmem_limit = _select_tiling(
        N, F_pad, C_pad, elem_bytes, tile_n, num_splits)
    N_pad = _round_up(N, tile_n * num_splits)
    steps = N_pad // (tile_n * num_splits)

    # Zero padding: padded batch rows / feature cols / component cols all
    # contribute exactly zero to the accumulated product.
    x_p = jnp.pad(x, ((0, N_pad - N), (0, F_pad - F))).astype(dt)
    q_p = jnp.pad(Q, ((0, F_pad - F), (0, C_pad - C))).astype(dt)

    out = pl.pallas_call(
        _oja_xtxq_kernel,
        out_shape=jax.ShapeDtypeStruct((num_splits, C_pad, F_pad), jnp.float32),
        grid_spec=pltpu.PrefetchScalarGridSpec(
            num_scalar_prefetch=0,
            grid=(num_splits, steps),
            in_specs=[
                # x batch tile: outer parallel split x inner reduction step.
                pl.BlockSpec((tile_n, F_pad), lambda s, i: (s * steps + i, 0)),
                # Q resident across the whole grid.
                pl.BlockSpec((F_pad, C_pad), lambda s, i: (0, 0)),
            ],
            # Per-split partial accumulator, resident across the inner axis.
            out_specs=pl.BlockSpec((None, C_pad, F_pad), lambda s, i: (s, 0, 0)),
        ),
        compiler_params=pltpu.CompilerParams(
            dimension_semantics=("parallel", "arbitrary"),
            vmem_limit_bytes=vmem_limit,
        ),
    )(x_p, q_p)

    # Combine the (tiny) per-core partials, undo padding and the (C, F)
    # orientation, then apply the Oja step outside the kernel.
    S = out.sum(axis=0)[:C, :F].T.astype(Q.dtype)  # (F, C)
    return Q + jnp.asarray(eta, Q.dtype) * S


class OjaPCA:
    """JAX/Pallas port of the PyTorch OjaPCA module (use_oja_plus=False)."""

    def __init__(self, n_features: int, n_components: int, eta: float = 0.5,
                 dtype=jnp.float32, seed: int = 0, compute_dtype=None):
        self.n_features = n_features
        self.n_components = n_components
        self.eta = eta
        self.compute_dtype = compute_dtype  # e.g. jnp.bfloat16 to halve x reads
        # Deterministic synthetic init of the Q buffer (torch.randn equivalent).
        self.Q = jax.random.normal(jax.random.PRNGKey(seed),
                                   (n_features, n_components), dtype=dtype)
        self.step = jnp.zeros((1,), dtype=jnp.int32)
        # TODO(synk): use_oja_plus column re-initialization path not implemented
        # (host-side data-dependent column overwrite with fresh randn).

    def forward(self, x: jax.Array) -> None:
        A = oja_pre_qr_update(x, self.Q, self.eta,
                              compute_dtype=self.compute_dtype)
        # torch.linalg.qr(...)[0] equivalent; small (F, C) problem in JAX glue.
        self.Q = jnp.linalg.qr(A)[0].astype(self.Q.dtype)
        self.step = self.step + 1

    def get_components(self) -> jax.Array:
        return self.Q

    def transform(self, x: jax.Array) -> jax.Array:
        return x @ self.Q

    def inverse_transform(self, x: jax.Array) -> jax.Array:
        return x @ self.Q.T


if __name__ == "__main__":
    # Small, deterministic example shapes.
    n_features = 32
    n_components = 8
    batch = 128

    key = jax.random.PRNGKey(0)
    kx, _ = jax.random.split(key)
    x = jax.random.normal(kx, (batch, n_features), dtype=jnp.float32)

    pca = OjaPCA(n_features=n_features, n_components=n_components, eta=0.5, seed=0)

    # Reference (pure JAX) for the pre-QR update.
    A_ref = pca.Q + pca.eta * (x.T @ (x @ pca.Q))

    # Exercise the tiled, two-way-split reduction grid explicitly.
    A_ker = oja_pre_qr_update(x, pca.Q, pca.eta, tile_n=16, num_splits=2)
    A_ker = jax.block_until_ready(A_ker)
    assert jnp.allclose(A_ker, A_ref, rtol=1e-3, atol=1e-3), "kernel mismatch (f32 tiled)"

    # Auto-tiled path (VMEM-sized batch tile, auto core split).
    A_auto = jax.block_until_ready(oja_pre_qr_update(x, pca.Q, pca.eta))
    assert jnp.allclose(A_auto, A_ref, rtol=1e-3, atol=1e-3), "kernel mismatch (auto)"

    # bf16 streaming path (halves the HBM-bound x read); relaxed tolerance.
    A_bf16 = jax.block_until_ready(
        oja_pre_qr_update(x, pca.Q, pca.eta, compute_dtype=jnp.bfloat16))
    assert jnp.allclose(A_bf16, A_ref, rtol=5e-2, atol=1.0), "kernel mismatch (bf16)"

    # Full stateful forward: Oja update + QR re-orthogonalization.
    pca.forward(x)
    Q_new = jax.block_until_ready(pca.Q)
    assert Q_new.shape == (n_features, n_components)
    gram = Q_new.T @ Q_new
    assert jnp.allclose(gram, jnp.eye(n_components), atol=1e-4)

    print("KERNEL_OK")
</pallas_src>

<mosaic_0001>
module attributes {stable_mosaic.version = 11 : i64} {
  func.func @_oja_xtxq_kernel(%arg0: i32, %arg1: i32, %arg2: memref<16x128xf32, #tpu.memory_space<vmem>>, %arg3: memref<128x128xf32, #tpu.memory_space<vmem>>, %arg4: memref<1x128x128xf32, #tpu.memory_space<vmem>>) attributes {dimension_semantics = [#tpu.dimension_semantics<parallel>, #tpu.dimension_semantics<arbitrary>], iteration_bounds = array<i64: 2, 4>, scalar_prefetch = 0 : i64, scratch_operands = 0 : i64, tpu.core_type = #tpu.core_type<tc>, window_params = [{transform_indices = @transform_0, window_bounds = array<i64: 16, 128>}, {pipeline_mode = #tpu.pipeline_mode<synchronous>, transform_indices = @transform_1, window_bounds = array<i64: 128, 128>}, {transform_indices = @transform_2, window_bounds = array<i64: 1, 128, 128>}]} {
    %c0_i32 = arith.constant 0 : i32
    %0 = arith.cmpi eq, %arg1, %c0_i32 : i32
    %1 = arith.extui %0 : i1 to i32
    %c0_i32_0 = arith.constant 0 : i32
    %2 = arith.cmpi ne, %1, %c0_i32_0 : i32
    scf.if %2 {
      %cst_11 = arith.constant 0.000000e+00 : f32
      %13 = vector.broadcast %cst_11 : f32 to vector<128x128xf32>
      %c0_12 = arith.constant 0 : index
      %c0_13 = arith.constant 0 : index
      %c0_14 = arith.constant 0 : index
      %14 = vector.load %arg4[%c0_12, %c0_13, %c0_14] : memref<1x128x128xf32, #tpu.memory_space<vmem>>, vector<1x128x128xf32>
      %15 = vector.shape_cast %14 : vector<1x128x128xf32> to vector<128x128xf32>
      %16 = vector.shape_cast %13 : vector<128x128xf32> to vector<1x128x128xf32>
      tpu.vector_store %arg4[%c0_12, %c0_13, %c0_14], %16 {strides = array<i32>} : memref<1x128x128xf32, #tpu.memory_space<vmem>>, vector<1x128x128xf32>,
    } else {
    }
    %c0 = arith.constant 0 : index
    %c0_1 = arith.constant 0 : index
    %3 = vector.load %arg2[%c0, %c0_1] : memref<16x128xf32, #tpu.memory_space<vmem>>, vector<16x128xf32>
    %c0_2 = arith.constant 0 : index
    %c0_3 = arith.constant 0 : index
    %4 = vector.load %arg3[%c0_2, %c0_3] : memref<128x128xf32, #tpu.memory_space<vmem>>, vector<128x128xf32>
    %cst = arith.constant dense<0.000000e+00> : vector<16x128xf32>
    %5 = tpu.matmul %3, %4, %cst {dimension_numbers = #tpu.dot_dimension_numbers<[1], [0], [0], [1], [0, 0, 1, 1], [], []>} : vector<16x128xf32>, vector<128x128xf32>, vector<16x128xf32> -> vector<16x128xf32>
    %c0_4 = arith.constant 0 : index
    %c0_5 = arith.constant 0 : index
    %c0_6 = arith.constant 0 : index
    %6 = vector.load %arg4[%c0_4, %c0_5, %c0_6] : memref<1x128x128xf32, #tpu.memory_space<vmem>>, vector<1x128x128xf32>
    %7 = vector.shape_cast %6 : vector<1x128x128xf32> to vector<128x128xf32>
    %cst_7 = arith.constant dense<0.000000e+00> : vector<128x128xf32>
    %8 = tpu.matmul %5, %3, %cst_7 {dimension_numbers = #tpu.dot_dimension_numbers<[0], [0], [1], [1], [0, 1, 1, 1], [], []>} : vector<16x128xf32>, vector<16x128xf32>, vector<128x128xf32> -> vector<128x128xf32>
    %9 = arith.addf %7, %8 : vector<128x128xf32>
    %c0_8 = arith.constant 0 : index
    %c0_9 = arith.constant 0 : index
    %c0_10 = arith.constant 0 : index
    %10 = vector.load %arg4[%c0_8, %c0_9, %c0_10] : memref<1x128x128xf32, #tpu.memory_space<vmem>>, vector<1x128x128xf32>
    %11 = vector.shape_cast %10 : vector<1x128x128xf32> to vector<128x128xf32>
    %12 = vector.shape_cast %9 : vector<128x128xf32> to vector<1x128x128xf32>
    tpu.vector_store %arg4[%c0_8, %c0_9, %c0_10], %12 {strides = array<i32>} : memref<1x128x128xf32, #tpu.memory_space<vmem>>, vector<1x128x128xf32>,
    return
  }
  func.func @transform_0(%arg0: i32, %arg1: i32) -> (i32, i32) {
    %c4_i32 = arith.constant 4 : i32
    %0 = arith.muli %arg0, %c4_i32 : i32
    %1 = arith.addi %0, %arg1 : i32
    %c0_i32 = arith.constant 0 : i32
    %c0_i32_0 = arith.constant 0 : i32
    return %1, %c0_i32 : i32, i32
  }
  func.func @transform_1(%arg0: i32, %arg1: i32) -> (i32, i32) {
    %c0_i32 = arith.constant 0 : i32
    %c0_i32_0 = arith.constant 0 : i32
    %c0_i32_1 = arith.constant 0 : i32
    return %c0_i32, %c0_i32_0 : i32, i32
  }
  func.func @transform_2(%arg0: i32, %arg1: i32) -> (i32, i32, i32) {
    %c0_i32 = arith.constant 0 : i32
    %c0_i32_0 = arith.constant 0 : i32
    %c0_i32_1 = arith.constant 0 : i32
    return %arg0, %c0_i32, %c0_i32_0 : i32, i32, i32
  }
}

</mosaic_0001>

<llo_original>
// kernel: tpu_custom_call.1
$region0: #{tpu_custom_call.1}
  #allocation0 [shape = 'u32[]', space=smem, size = 0x4, offset = 0x4, fixed_abs, tag = 'smem constant byte address 0x4 - core index']
  #allocation1 [shape = 'u32[144,128]{1,0:T(1,128)}', space=vmem, size = 0x12000, scoped, tag = 'internal scratch']
  %s0 = inlined_call_operand.hbm [shape: f32[128,128], index: 0, kind: input, shape index: {}]
  %s1 = inlined_call_operand.hbm [shape: f32[128,128], index: 1, kind: input, shape index: {}]
  %s2 = inlined_call_operand.hbm [shape: f32[2,128,128], index: 2, kind: output, shape index: {}]
  %s3 = sld [smem:[#allocation0]]
  $region53: #{tpu_custom_call.1} parent=0
    _
  %s5 = ssub.s32 1, %s3
  %s6 = scalar_select 0, %s5, %s3
  $region1: #{tpu_custom_call.1} parent=0
    #allocation2 [shape = 'u8[16384]{0}', space=vmem, size = 0x4000, scoped, tag = 'input window, operand 0']
    #allocation3 [shape = 's32[2]{0}', space=sflag, size = 0x8, scoped, tag = 'scoped memory for tpu_custom_call.1']
    #allocation4 [shape = 's32[2]{0}', space=sflag, size = 0x8, scoped, tag = 'scoped memory for tpu_custom_call.1']
    #allocation5 [shape = 'u8[65536]{0}', space=vmem, size = 0x10000, scoped, tag = 'input window, operand 1, single buffered']
    #allocation6 [shape = 's32[1]{0}', space=sflag, size = 0x4, scoped, tag = 'scoped memory for tpu_custom_call.1']
    #allocation7 [shape = 'u8[131072]{0}', space=vmem, size = 0x20000, scoped, tag = 'output window, operand 0']
    %7 = vsyncpa [#allocation3], 0
    %s8 = scalar_lea.sflag [#allocation3], 1
    %9 = vsyncpa %s8, 0
    %10 = vsyncpa [#allocation6], 0
    %11 = vsyncpa [#allocation4], 0
    %s12 = scalar_lea.sflag [#allocation4], 1
    %13 = vsyncpa %s12, 0
    loop: start=0, step=1, limit=10
    $region2: #{tpu_custom_call.1} parent=1 // loop_pre_header
      _
    $region3: #{tpu_custom_call.1} parent=1 // loop_header
      %s15 = sphi 0, %s19
      %p16 = scmp.ge.s32.totalorder %s15, 10
      %s22 = sphi 0, %s34
      %s23 = sphi 0, %s30
      %s24 = sphi 0, %s22
      %s25 = sphi 0, %s23
      %s26 = sphi 0, %s24
      %s27 = sphi 0, %s25
      %s41 = sphi 0, %s43
      %s44 = sphi 0, %s41
      %s45 = sphi 0, %s44
      %s61 = sphi 0, %s45
      %s65 = sphi 0, %s65
      %s67 = sphi 0, %s65
      %s68 = sphi 0, %s67
      %s82 = sphi 0, %s68
      %s88 = sphi 0, %s90
      %s91 = sphi 0, %s88
      %s92 = sphi 0, %s91
      %s108 = sphi 0, %s92
    $region4: #{tpu_custom_call.1} parent=1 // loop_header_branch
      %18 = sbr.rel (%p16) target = $region8
    $region5: #{tpu_custom_call.1} parent=1 // loop_body
      %s20 = ssub.s32 %s15, 1
      %s21 = ssub.s32 %s15, 2
      %s28 = sadd.s32 1, %s23
      %p29 = scmp.ge.s32.totalorder %s28, 4
      %s30 = scalar_select %p29, 0, %s28
      %s31 = sadd.s32 1, %s22
      %s32 = scalar_select %p29, %s31, %s22
      %p33 = scmp.ge.s32.totalorder %s32, 2
      %s34 = scalar_select %p33, 0, %s32
      %s35 = smul.u32 %s22, 4
      %s36 = sadd.s32 %s35, %s23
      %s37 = smul.u32 %s34, 4
      %s38 = sadd.s32 %s37, %s30
      %s39 = ssub.s32 %s36, %s38
      %p40 = scmp.eq.s32.totalorder %s39, 0
      %s42 = sadd.s32 %s41, 1
      %s43 = scalar_select %p40, %s41, %s42
      %p46 = pneg %p40
      %p47 = scmp.eq.s32.totalorder %s15, 7
      %p48 = por %p46, %p47
      %p49 = scmp.ne.s32.totalorder %s41, %s44
      %p50 = scmp.eq.s32.totalorder %s15, 0
      %p51 = por %p49, %p50
      %p52 = scmp.ne.s32.totalorder %s41, %s44
      %p53 = scmp.eq.s32.totalorder %s20, 7
      %p54 = por %p52, %p53
      %p55 = scmp.ne.s32.totalorder %s44, %s45
      %p56 = scmp.eq.s32.totalorder %s20, 0
      %p57 = por %p55, %p56
      %p58 = scmp.ne.s32.totalorder %s44, %s45
      %p59 = scmp.eq.s32.totalorder %s21, 7
      %p60 = por %p58, %p59
      %p62 = scmp.ne.s32.totalorder %s45, %s61
      %p63 = scmp.eq.s32.totalorder %s21, 0
      %p64 = por %p62, %p63
      %s66 = sadd.s32 %s65, 1
      %p69 = scmp.eq.s32.totalorder %s15, 7
      %p70 = scmp.ne.s32.totalorder %s65, %s67
      %p71 = scmp.eq.s32.totalorder %s15, 0
      %p72 = por %p70, %p71
      %p73 = scmp.ne.s32.totalorder %s65, %s67
      %p74 = scmp.eq.s32.totalorder %s20, 7
      %p75 = por %p73, %p74
      %p76 = scmp.ne.s32.totalorder %s67, %s68
      %p77 = scmp.eq.s32.totalorder %s20, 0
      %p78 = por %p76, %p77
      %p79 = scmp.ne.s32.totalorder %s67, %s68
      %p80 = scmp.eq.s32.totalorder %s21, 7
      %p81 = por %p79, %p80
      %p83 = scmp.ne.s32.totalorder %s68, %s82
      %p84 = scmp.eq.s32.totalorder %s21, 0
      %p85 = por %p83, %p84
      %s86 = ssub.s32 %s22, %s34
      %p87 = scmp.eq.s32.totalorder %s86, 0
      %s89 = sadd.s32 %s88, 1
      %s90 = scalar_select %p87, %s88, %s89
      %p93 = pneg %p87
      %p94 = scmp.eq.s32.totalorder %s15, 7
      %p95 = por %p93, %p94
      %p96 = scmp.ne.s32.totalorder %s88, %s91
      %p97 = scmp.eq.s32.totalorder %s15, 0
      %p98 = por %p96, %p97
      %p99 = scmp.ne.s32.totalorder %s88, %s91
      %p100 = scmp.eq.s32.totalorder %s20, 7
      %p101 = por %p99, %p100
      %p102 = scmp.ne.s32.totalorder %s91, %s92
      %p103 = scmp.eq.s32.totalorder %s20, 0
      %p104 = por %p102, %p103
      %p105 = scmp.ne.s32.totalorder %s91, %s92
      %p106 = scmp.eq.s32.totalorder %s21, 7
      %p107 = por %p105, %p106
      %p109 = scmp.ne.s32.totalorder %s92, %s108
      %p110 = scmp.eq.s32.totalorder %s21, 0
      %p111 = por %p109, %p110
      %p112 = scmp.le.s32.totalorder 1, %s15
      %p113 = scmp.lt.s32.totalorder %s15, 9
      %p114 = pnand %p112, %p113
      %p115 = pneg %p114
      // Predicated region
      $region9: #{tpu_custom_call.1} parent=5 // pred_check
        _
      $region10: #{tpu_custom_call.1} parent=5 // pred_check_branch
        %117 = sbr.rel (%p114) target = $region12
      $region11: #{tpu_custom_call.1} parent=5 // pred_region
        %s118 = ssub.s32 %s15, 1
        // Predicated region
        $region13: #{tpu_custom_call.1} parent=11 // pred_check
          %p119 = pneg %p78
        $region14: #{tpu_custom_call.1} parent=11 // pred_check_branch
          %121 = sbr.rel (%p119) target = $region16
        $region15: #{tpu_custom_call.1} parent=11 // pred_region
          %s123 = ssub.s32 2048, 2048
          %124 = vsyncadd [#allocation6], %s123
          %s125 = sshll.u32 [#allocation5], 4
          %s126 = int_to_ptr.vmem [resolvable:$true] %s125
          %131 = dma.hbm_to_vmem [thread:$0]  %s1, 2048, %s126, [#allocation6], 128, 128, 8
        $region16: #{tpu_custom_call.1} parent=11 // pred_fallthru
          _
      $region12: #{tpu_custom_call.1} parent=5 // pred_fallthru
        _
      %p132 = scmp.lt.s32.totalorder %s15, 8
      // Predicated region
      $region17: #{tpu_custom_call.1} parent=5 // pred_check
        %p133 = pneg %p132
      $region18: #{tpu_custom_call.1} parent=5 // pred_check_branch
        %135 = sbr.rel (%p133) target = $region20
      $region19: #{tpu_custom_call.1} parent=5 // pred_region
        // Predicated region
        $region21: #{tpu_custom_call.1} parent=19 // pred_check
          %p136 = pneg %p51
        $region22: #{tpu_custom_call.1} parent=19 // pred_check_branch
          %138 = sbr.rel (%p136) target = $region24
        $region23: #{tpu_custom_call.1} parent=19 // pred_region
          %s139 = sand.u32 %s41, 1
          %s140 = scalar_lea.sflag [#allocation3], %s139
          %s141 = sand.u32 %s41, 1
          %s142 = smul.addr %s141, 16
          %s143 = scalar_lea.vmem [#allocation2], %s142
          %s144 = smul.u32 %s22, 4
          %s145 = sadd.s32 %s144, %s23
          %s146 = smul.u32 2, %s145
          %s148 = ssub.s32 256, 256
          %149 = vsyncadd %s140, %s148
          %s150 = smul.addr %s146, 128
          %s151 = scalar_lea.hbm %s0, %s150
          %s152 = sshll.u32 %s143, 4
          %s153 = int_to_ptr.vmem [resolvable:$true] %s152
          %158 = dma.hbm_to_vmem [thread:$0]  %s151, 256, %s153, %s140, 128, 128, 8
        $region24: #{tpu_custom_call.1} parent=19 // pred_fallthru
          _
      $region20: #{tpu_custom_call.1} parent=5 // pred_fallthru
        _
      %p159 = scmp.le.s32.totalorder 1, %s15
      %p160 = scmp.lt.s32.totalorder %s15, 9
      %p161 = pnand %p159, %p160
      %p162 = pneg %p161
      // Predicated region
      $region25: #{tpu_custom_call.1} parent=5 // pred_check
        _
      $region26: #{tpu_custom_call.1} parent=5 // pred_check_branch
        %164 = sbr.rel (%p161) target = $region28
      $region27: #{tpu_custom_call.1} parent=5 // pred_region
        %s165 = ssub.s32 %s15, 1
        %s166 = sand.u32 %s44, 1
        %s167 = scalar_lea.sflag [#allocation3], %s166
        %s168 = sand.u32 %s44, 1
        %s169 = smul.addr %s168, 16
        %s170 = scalar_lea.vmem [#allocation2], %s169
        // Predicated region
        $region29: #{tpu_custom_call.1} parent=27 // pred_check
          %p171 = pneg %p57
        $region30: #{tpu_custom_call.1} parent=27 // pred_check_branch
          %173 = sbr.rel (%p171) target = $region32
        $region31: #{tpu_custom_call.1} parent=27 // pred_region
          %174 = dma.done %s167, 256
        $region32: #{tpu_custom_call.1} parent=27 // pred_fallthru
          _
        // Predicated region
        $region33: #{tpu_custom_call.1} parent=27 // pred_check
          %p175 = pneg %p78
        $region34: #{tpu_custom_call.1} parent=27 // pred_check_branch
          %177 = sbr.rel (%p175) target = $region36
        $region35: #{tpu_custom_call.1} parent=27 // pred_region
          %178 = dma.done [#allocation6], 2048
        $region36: #{tpu_custom_call.1} parent=27 // pred_fallthru
          _
        %s179 = sand.u32 %s44, 1
        %s180 = scalar_lea.sflag [#allocation3], %s179
        %s181 = sand.u32 %s44, 1
        %s182 = smul.addr %s181, 16
        %s183 = scalar_lea.vmem [#allocation2], %s182
        %p184 = pneg %p57
        %p185 = pneg %p54
        %p186 = pneg %p78
        %p187 = pneg %p75
        %p188 = pneg %p104
        %p189 = pneg %p101
        %s190 = sand.u32 %s91, 1
        %s191 = scalar_lea.sflag [#allocation4], %s190
        %s192 = sand.u32 %s91, 1
        %s193 = smul.addr %s192, 128
        %s194 = scalar_lea.vmem [#allocation7], %s193
        %s195 = smul.u32 %s24, 4
        %s196 = sadd.s32 %s195, %s25
        %s197 = smul.u32 2, %s196
        %p198 = scmp.eq.s32.totalorder %s25, 0
        // Predicated region
        $region37: #{tpu_custom_call.1} parent=27 // pred_check
          %p199 = pneg %p198
        $region38: #{tpu_custom_call.1} parent=27 // pred_check_branch
          %201 = sbr.rel (%p199) target = $region40
        $region39: #{tpu_custom_call.1} parent=27 // pred_region
          %202 = vst [vmem:[%s194] sm:$0xff] 0.0
          %203 = vst [vmem:[%s194 + $0x8] sm:$0xff] 0.0
          %204 = vst [vmem:[%s194 + $0x10] sm:$0xff] 0.0
          %205 = vst [vmem:[%s194 + $0x18] sm:$0xff] 0.0
          %206 = vst [vmem:[%s194 + $0x20] sm:$0xff] 0.0
          %207 = vst [vmem:[%s194 + $0x28] sm:$0xff] 0.0
          %208 = vst [vmem:[%s194 + $0x30] sm:$0xff] 0.0
          %209 = vst [vmem:[%s194 + $0x38] sm:$0xff] 0.0
          %210 = vst [vmem:[%s194 + $0x40] sm:$0xff] 0.0
          %211 = vst [vmem:[%s194 + $0x48] sm:$0xff] 0.0
          %212 = vst [vmem:[%s194 + $0x50] sm:$0xff] 0.0
          %213 = vst [vmem:[%s194 + $0x58] sm:$0xff] 0.0
          %214 = vst [vmem:[%s194 + $0x60] sm:$0xff] 0.0
          %215 = vst [vmem:[%s194 + $0x68] sm:$0xff] 0.0
          %216 = vst [vmem:[%s194 + $0x70] sm:$0xff] 0.0
          %217 = vst [vmem:[%s194 + $0x78] sm:$0xff] 0.0
        $region40: #{tpu_custom_call.1} parent=27 // pred_fallthru
          _
        %v218 = vld [vmem:[%s170] sm:$0xff]
        %v219 = vld [vmem:[%s170 + $0x8] sm:$0xff]
        %v220 = vld [vmem:[#allocation5] sm:$0xff]
        %v221 = vld [vmem:[#allocation5 + $0x8] sm:$0xff]
        %v222 = vld [vmem:[#allocation5 + $0x10] sm:$0xff]
        %v223 = vld [vmem:[#allocation5 + $0x18] sm:$0xff]
        %v224 = vld [vmem:[#allocation5 + $0x20] sm:$0xff]
        %v225 = vld [vmem:[#allocation5 + $0x28] sm:$0xff]
        %v226 = vld [vmem:[#allocation5 + $0x30] sm:$0xff]
        %v227 = vld [vmem:[#allocation5 + $0x38] sm:$0xff]
        %v228 = vld [vmem:[#allocation5 + $0x40] sm:$0xff]
        %v229 = vld [vmem:[#allocation5 + $0x48] sm:$0xff]
        %v230 = vld [vmem:[#allocation5 + $0x50] sm:$0xff]
        %v231 = vld [vmem:[#allocation5 + $0x58] sm:$0xff]
        %v232 = vld [vmem:[#allocation5 + $0x60] sm:$0xff]
        %v233 = vld [vmem:[#allocation5 + $0x68] sm:$0xff]
        %v234 = vld [vmem:[#allocation5 + $0x70] sm:$0xff]
        %v235 = vld [vmem:[#allocation5 + $0x78] sm:$0xff]
        %236 = vmatprep.subr.mxu0 0.0
        %237 = vmatpush1.msra.mxu0 %v220
        %238 = vmatprep.subr.mxu0 0.0
        %239 = vmatpush1.msra.mxu0 %v221
        %240 = vmatprep.subr.mxu0 0.0
        %241 = vmatpush1.msra.mxu0 %v222
        %242 = vmatprep.subr.mxu0 0.0
        %243 = vmatpush1.msra.mxu0 %v223
        %244 = vmatprep.subr.mxu0 0.0
        %245 = vmatpush1.msra.mxu0 %v224
        %246 = vmatprep.subr.mxu0 0.0
        %247 = vmatpush1.msra.mxu0 %v225
        %248 = vmatprep.subr.mxu0 0.0
        %249 = vmatpush1.msra.mxu0 %v226
        %250 = vmatprep.subr.mxu0 0.0
        %251 = vmatpush1.msra.mxu0 %v227
        %252 = vmatprep.subr.mxu0 0.0
        %253 = vmatpush1.msra.mxu0 %v228
        %254 = vmatprep.subr.mxu0 0.0
        %255 = vmatpush1.msra.mxu0 %v229
        %256 = vmatprep.subr.mxu0 0.0
        %257 = vmatpush1.msra.mxu0 %v230
        %258 = vmatprep.subr.mxu0 0.0
        %259 = vmatpush1.msra.mxu0 %v231
        %260 = vmatprep.subr.mxu0 0.0
        %261 = vmatpush1.msra.mxu0 %v232
        %262 = vmatprep.subr.mxu0 0.0
        %263 = vmatpush1.msra.mxu0 %v233
        %264 = vmatprep.subr.mxu0 0.0
        %265 = vmatpush1.msra.mxu0 %v234
        %266 = vmatprep.subr.mxu0 0.0
        %267 = vmatpush1.msra.mxu0 %v235
        %268 = vmatprep.subr.mxu0 0.0
        %269 = vmatpush1.msra.mxu0 0.0
        %270 = vmatprep.subr.mxu0 0.0
        %271 = vmatpush1.msra.mxu0 0.0
        %272 = vmatprep.subr.mxu0 0.0
        %273 = vmatpush1.msra.mxu0 0.0
        %274 = vmatprep.subr.mxu0 0.0
        %275 = vmatpush1.msra.mxu0 0.0
        %276 = vmatprep.subr.mxu0 0.0
        %277 = vmatpush1.msra.mxu0 0.0
        %278 = vmatprep.subr.mxu0 0.0
        %279 = vmatpush1.msra.mxu0 0.0
        %280 = vmatprep.subr.mxu0 0.0
        %281 = vmatpush1.msra.mxu0 0.0
        %282 = vmatprep.subr.mxu0 0.0
        %283 = vmatpush1.msra.mxu0 0.0
        %284 = vmatprep.subr.mxu0 0.0
        %285 = vmatpush1.msra.mxu0 0.0
        %286 = vmatprep.subr.mxu0 0.0
        %287 = vmatpush1.msra.mxu0 0.0
        %288 = vmatprep.subr.mxu0 0.0
        %289 = vmatpush1.msra.mxu0 0.0
        %290 = vmatprep.subr.mxu0 0.0
        %291 = vmatpush1.msra.mxu0 0.0
        %292 = vmatprep.subr.mxu0 0.0
        %293 = vmatpush1.msra.mxu0 0.0
        %294 = vmatprep.subr.mxu0 0.0
        %295 = vmatpush1.msra.mxu0 0.0
        %296 = vmatprep.subr.mxu0 0.0
        %297 = vmatpush1.msra.mxu0 0.0
        %298 = vmatprep.subr.mxu0 0.0
        %299 = vmatpush1.msra.mxu0 0.0
        %300 = vmatprep.mubr.f32.mxu0 0.0
        %301 = vmatmul.mubr.f32.gmra.mrb[0].mxu0 %v218
        %v302 = vpop.f32.mrb[0].mxu0
        %v303 = vadd.f32 0.0, %v302
        %v304 = vpop.f32.mrb[0].mxu0
        %305 = vmatprep.mubr.f32.mxu0 0.0
        %306 = vmatmul.mubr.f32.gmra.mrb[0].mxu0 %v219
        %v307 = vpop.f32.mrb[0].mxu0
        %v308 = vadd.f32 0.0, %v307
        %v309 = vpop.f32.mrb[0].mxu0
        %310 = vdwg.mxu0
        %v311 = vld [vmem:[%s194] sm:$0xff]
        %v312 = vld [vmem:[%s194 + $0x8] sm:$0xff]
        %v313 = vld [vmem:[%s194 + $0x10] sm:$0xff]
        %v314 = vld [vmem:[%s194 + $0x18] sm:$0xff]
        %v315 = vld [vmem:[%s194 + $0x20] sm:$0xff]
        %v316 = vld [vmem:[%s194 + $0x28] sm:$0xff]
        %v317 = vld [vmem:[%s194 + $0x30] sm:$0xff]
        %v318 = vld [vmem:[%s194 + $0x38] sm:$0xff]
        %v319 = vld [vmem:[%s194 + $0x40] sm:$0xff]
        %v320 = vld [vmem:[%s194 + $0x48] sm:$0xff]
        %v321 = vld [vmem:[%s194 + $0x50] sm:$0xff]
        %v322 = vld [vmem:[%s194 + $0x58] sm:$0xff]
        %v323 = vld [vmem:[%s194 + $0x60] sm:$0xff]
        %v324 = vld [vmem:[%s194 + $0x68] sm:$0xff]
        %v325 = vld [vmem:[%s194 + $0x70] sm:$0xff]
        %v326 = vld [vmem:[%s194 + $0x78] sm:$0xff]
        %327 = vxpose.xlu0.b32.start [1/16] %v303, 128
        %328 = vxpose.xlu0.b32.cont [2/16] %v308, 128
        %329 = vxpose.xlu0.b32.cont [3/16] 0.0, 128
        %330 = vxpose.xlu0.b32.cont [4/16] 0.0, 128
        %331 = vxpose.xlu0.b32.cont [5/16] 0.0, 128
        %332 = vxpose.xlu0.b32.cont [6/16] 0.0, 128
        %333 = vxpose.xlu0.b32.cont [7/16] 0.0, 128
        %334 = vxpose.xlu0.b32.cont [8/16] 0.0, 128
        %335 = vxpose.xlu0.b32.cont [9/16] 0.0, 128
        %336 = vxpose.xlu0.b32.cont [10/16] 0.0, 128
        %337 = vxpose.xlu0.b32.cont [11/16] 0.0, 128
        %338 = vxpose.xlu0.b32.cont [12/16] 0.0, 128
        %339 = vxpose.xlu0.b32.cont [13/16] 0.0, 128
        %340 = vxpose.xlu0.b32.cont [14/16] 0.0, 128
        %341 = vxpose.xlu0.b32.cont [15/16] 0.0, 128
        %342 = vxpose.xlu0.b32.end [16/16] 0.0, 128
        %v343 = vpop.trf.xlu0
        %v344 = vpop.trf.xlu0
        %v345 = vpop.trf.xlu0
        %v346 = vpop.trf.xlu0
        %v347 = vpop.trf.xlu0
        %v348 = vpop.trf.xlu0
        %v349 = vpop.trf.xlu0
        %v350 = vpop.trf.xlu0
        %v351 = vpop.trf.xlu0
        %v352 = vpop.trf.xlu0
        %v353 = vpop.trf.xlu0
        %v354 = vpop.trf.xlu0
        %v355 = vpop.trf.xlu0
        %v356 = vpop.trf.xlu0
        %v357 = vpop.trf.xlu0
        %v358 = vpop.trf.xlu0
        %vm359 = vcmask 130048
        %v361 = vsel %vm359, %v343, 0
        %v364 = vsel %vm359, %v344, 0
        %v367 = vsel %vm359, %v345, 0
        %v370 = vsel %vm359, %v346, 0
        %v373 = vsel %vm359, %v347, 0
        %v376 = vsel %vm359, %v348, 0
        %v379 = vsel %vm359, %v349, 0
        %v382 = vsel %vm359, %v350, 0
        %v385 = vsel %vm359, %v351, 0
        %v388 = vsel %vm359, %v352, 0
        %v391 = vsel %vm359, %v353, 0
        %v394 = vsel %vm359, %v354, 0
        %v397 = vsel %vm359, %v355, 0
        %v400 = vsel %vm359, %v356, 0
        %v403 = vsel %vm359, %v357, 0
        %v406 = vsel %vm359, %v358, 0
        %408 = vmatprep.subr.mxu0 0.0
        %409 = vmatpush1.msra.mxu0 %v218
        %410 = vmatprep.subr.mxu0 0.0
        %411 = vmatpush1.msra.mxu0 %v219
        %412 = vmatprep.subr.mxu0 0.0
        %413 = vmatpush1.msra.mxu0 0.0
        %414 = vmatprep.subr.mxu0 0.0
        %415 = vmatpush1.msra.mxu0 0.0
        %416 = vmatprep.subr.mxu0 0.0
        %417 = vmatpush1.msra.mxu0 0.0
        %418 = vmatprep.subr.mxu0 0.0
        %419 = vmatpush1.msra.mxu0 0.0
        %420 = vmatprep.subr.mxu0 0.0
        %421 = vmatpush1.msra.mxu0 0.0
        %422 = vmatprep.subr.mxu0 0.0
        %423 = vmatpush1.msra.mxu0 0.0
        %424 = vmatprep.subr.mxu0 0.0
        %425 = vmatpush1.msra.mxu0 0.0
        %426 = vmatprep.subr.mxu0 0.0
        %427 = vmatpush1.msra.mxu0 0.0
        %428 = vmatprep.subr.mxu0 0.0
        %429 = vmatpush1.msra.mxu0 0.0
        %430 = vmatprep.subr.mxu0 0.0
        %431 = vmatpush1.msra.mxu0 0.0
        %432 = vmatprep.subr.mxu0 0.0
        %433 = vmatpush1.msra.mxu0 0.0
        %434 = vmatprep.subr.mxu0 0.0
        %435 = vmatpush1.msra.mxu0 0.0
        %436 = vmatprep.subr.mxu0 0.0
        %437 = vmatpush1.msra.mxu0 0.0
        %438 = vmatprep.subr.mxu0 0.0
        %439 = vmatpush1.msra.mxu0 0.0
        %440 = vmatprep.subr.mxu0 0.0
        %441 = vmatpush1.msra.mxu0 0.0
        %442 = vmatprep.subr.mxu0 0.0
        %443 = vmatpush1.msra.mxu0 0.0
        %444 = vmatprep.subr.mxu0 0.0
        %445 = vmatpush1.msra.mxu0 0.0
        %446 = vmatprep.subr.mxu0 0.0
        %447 = vmatpush1.msra.mxu0 0.0
        %448 = vmatprep.subr.mxu0 0.0
        %449 = vmatpush1.msra.mxu0 0.0
        %450 = vmatprep.subr.mxu0 0.0
        %451 = vmatpush1.msra.mxu0 0.0
        %452 = vmatprep.subr.mxu0 0.0
        %453 = vmatpush1.msra.mxu0 0.0
        %454 = vmatprep.subr.mxu0 0.0
        %455 = vmatpush1.msra.mxu0 0.0
        %456 = vmatprep.subr.mxu0 0.0
        %457 = vmatpush1.msra.mxu0 0.0
        %458 = vmatprep.subr.mxu0 0.0
        %459 = vmatpush1.msra.mxu0 0.0
        %460 = vmatprep.subr.mxu0 0.0
        %461 = vmatpush1.msra.mxu0 0.0
        %462 = vmatprep.subr.mxu0 0.0
        %463 = vmatpush1.msra.mxu0 0.0
        %464 = vmatprep.subr.mxu0 0.0
        %465 = vmatpush1.msra.mxu0 0.0
        %466 = vmatprep.subr.mxu0 0.0
        %467 = vmatpush1.msra.mxu0 0.0
        %468 = vmatprep.subr.mxu0 0.0
        %469 = vmatpush1.msra.mxu0 0.0
        %470 = vmatprep.subr.mxu0 0.0
        %471 = vmatpush1.msra.mxu0 0.0
        %472 = vmatprep.mubr.f32.mxu0 0.0
        %473 = vmatmul.mubr.f32.gmra.mrb[0].mxu0 %v361
        %v474 = vpop.f32.mrb[0].mxu0
        %v475 = vadd.f32 0.0, %v474
        %v476 = vpop.f32.mrb[0].mxu0
        %477 = vmatprep.mubr.f32.mxu0 0.0
        %478 = vmatmul.mubr.f32.gmra.mrb[0].mxu0 %v364
        %v479 = vpop.f32.mrb[0].mxu0
        %v480 = vadd.f32 0.0, %v479
        %v481 = vpop.f32.mrb[0].mxu0
        %482 = vmatprep.mubr.f32.mxu0 0.0
        %483 = vmatmul.mubr.f32.gmra.mrb[0].mxu0 %v367
        %v484 = vpop.f32.mrb[0].mxu0
        %v485 = vadd.f32 0.0, %v484
        %v486 = vpop.f32.mrb[0].mxu0
        %487 = vmatprep.mubr.f32.mxu0 0.0
        %488 = vmatmul.mubr.f32.gmra.mrb[0].mxu0 %v370
        %v489 = vpop.f32.mrb[0].mxu0
        %v490 = vadd.f32 0.0, %v489
        %v491 = vpop.f32.mrb[0].mxu0
        %492 = vmatprep.mubr.f32.mxu0 0.0
        %493 = vmatmul.mubr.f32.gmra.mrb[0].mxu0 %v373
        %v494 = vpop.f32.mrb[0].mxu0
        %v495 = vadd.f32 0.0, %v494
        %v496 = vpop.f32.mrb[0].mxu0
        %497 = vmatprep.mubr.f32.mxu0 0.0
        %498 = vmatmul.mubr.f32.gmra.mrb[0].mxu0 %v376
        %v499 = vpop.f32.mrb[0].mxu0
        %v500 = vadd.f32 0.0, %v499
        %v501 = vpop.f32.mrb[0].mxu0
        %502 = vmatprep.mubr.f32.mxu0 0.0
        %503 = vmatmul.mubr.f32.gmra.mrb[0].mxu0 %v379
        %v504 = vpop.f32.mrb[0].mxu0
        %v505 = vadd.f32 0.0, %v504
        %v506 = vpop.f32.mrb[0].mxu0
        %507 = vmatprep.mubr.f32.mxu0 0.0
        %508 = vmatmul.mubr.f32.gmra.mrb[0].mxu0 %v382
        %v509 = vpop.f32.mrb[0].mxu0
        %v510 = vadd.f32 0.0, %v509
        %v511 = vpop.f32.mrb[0].mxu0
        %512 = vmatprep.mubr.f32.mxu0 0.0
        %513 = vmatmul.mubr.f32.gmra.mrb[0].mxu0 %v385
        %v514 = vpop.f32.mrb[0].mxu0
        %v515 = vadd.f32 0.0, %v514
        %v516 = vpop.f32.mrb[0].mxu0
        %517 = vmatprep.mubr.f32.mxu0 0.0
        %518 = vmatmul.mubr.f32.gmra.mrb[0].mxu0 %v388
        %v519 = vpop.f32.mrb[0].mxu0
        %v520 = vadd.f32 0.0, %v519
        %v521 = vpop.f32.mrb[0].mxu0
        %522 = vmatprep.mubr.f32.mxu0 0.0
        %523 = vmatmul.mubr.f32.gmra.mrb[0].mxu0 %v391
        %v524 = vpop.f32.mrb[0].mxu0
        %v525 = vadd.f32 0.0, %v524
        %v526 = vpop.f32.mrb[0].mxu0
        %527 = vmatprep.mubr.f32.mxu0 0.0
        %528 = vmatmul.mubr.f32.gmra.mrb[0].mxu0 %v394
        %v529 = vpop.f32.mrb[0].mxu0
        %v530 = vadd.f32 0.0, %v529
        %v531 = vpop.f32.mrb[0].mxu0
        %532 = vmatprep.mubr.f32.mxu0 0.0
        %533 = vmatmul.mubr.f32.gmra.mrb[0].mxu0 %v397
        %v534 = vpop.f32.mrb[0].mxu0
        %v535 = vadd.f32 0.0, %v534
        %v536 = vpop.f32.mrb[0].mxu0
        %537 = vmatprep.mubr.f32.mxu0 0.0
        %538 = vmatmul.mubr.f32.gmra.mrb[0].mxu0 %v400
        %v539 = vpop.f32.mrb[0].mxu0
        %v540 = vadd.f32 0.0, %v539
        %v541 = vpop.f32.mrb[0].mxu0
        %542 = vmatprep.mubr.f32.mxu0 0.0
        %543 = vmatmul.mubr.f32.gmra.mrb[0].mxu0 %v403
        %v544 = vpop.f32.mrb[0].mxu0
        %v545 = vadd.f32 0.0, %v544
        %v546 = vpop.f32.mrb[0].mxu0
        %547 = vmatprep.mubr.f32.mxu0 0.0
        %548 = vmatmul.mubr.f32.gmra.mrb[0].mxu0 %v406
        %v549 = vpop.f32.mrb[0].mxu0
        %v550 = vadd.f32 0.0, %v549
        %v551 = vpop.f32.mrb[0].mxu0
        %552 = vdwg.mxu0
        %v553 = vadd.f32 %v311, %v475
        %v554 = vadd.f32 %v312, %v480
        %v555 = vadd.f32 %v313, %v485
        %v556 = vadd.f32 %v314, %v490
        %v557 = vadd.f32 %v315, %v495
        %v558 = vadd.f32 %v316, %v500
        %v559 = vadd.f32 %v317, %v505
        %v560 = vadd.f32 %v318, %v510
        %v561 = vadd.f32 %v319, %v515
        %v562 = vadd.f32 %v320, %v520
        %v563 = vadd.f32 %v321, %v525
        %v564 = vadd.f32 %v322, %v530
        %v565 = vadd.f32 %v323, %v535
        %v566 = vadd.f32 %v324, %v540
        %v567 = vadd.f32 %v325, %v545
        %v568 = vadd.f32 %v326, %v550
        %569 = vst [vmem:[%s194] sm:$0xff] %v553
        %570 = vst [vmem:[%s194 + $0x8] sm:$0xff] %v554
        %571 = vst [vmem:[%s194 + $0x10] sm:$0xff] %v555
        %572 = vst [vmem:[%s194 + $0x18] sm:$0xff] %v556
        %573 = vst [vmem:[%s194 + $0x20] sm:$0xff] %v557
        %574 = vst [vmem:[%s194 + $0x28] sm:$0xff] %v558
        %575 = vst [vmem:[%s194 + $0x30] sm:$0xff] %v559
        %576 = vst [vmem:[%s194 + $0x38] sm:$0xff] %v560
        %577 = vst [vmem:[%s194 + $0x40] sm:$0xff] %v561
        %578 = vst [vmem:[%s194 + $0x48] sm:$0xff] %v562
        %579 = vst [vmem:[%s194 + $0x50] sm:$0xff] %v563
        %580 = vst [vmem:[%s194 + $0x58] sm:$0xff] %v564
        %581 = vst [vmem:[%s194 + $0x60] sm:$0xff] %v565
        %582 = vst [vmem:[%s194 + $0x68] sm:$0xff] %v566
        %583 = vst [vmem:[%s194 + $0x70] sm:$0xff] %v567
        %584 = vst [vmem:[%s194 + $0x78] sm:$0xff] %v568
        %s585 = sand.u32 %s91, 1
        %s586 = scalar_lea.sflag [#allocation4], %s585
        %s587 = sand.u32 %s91, 1
        %s588 = smul.addr %s587, 128
        %s589 = scalar_lea.vmem [#allocation7], %s588
        // Predicated region
        $region41: #{tpu_custom_call.1} parent=27 // pred_check
          %p590 = pneg %p101
        $region42: #{tpu_custom_call.1} parent=27 // pred_check_branch
          %592 = sbr.rel (%p590) target = $region44
        $region43: #{tpu_custom_call.1} parent=27 // pred_region
          %s594 = ssub.s32 2048, 2048
          %595 = vsyncadd %s586, %s594
          %s596 = smul.addr %s24, 16
          %s597 = smul.addr %s596, 128
          %s598 = scalar_lea.hbm %s2, %s597
          %s599 = sshll.u32 %s589, 4
          %s600 = int_to_ptr.vmem [resolvable:$true] %s599
          %605 = dma.vmem_to_hbm [thread:$0]  %s600, 2048, %s598, %s586, 128, 128, 8
        $region44: #{tpu_custom_call.1} parent=27 // pred_fallthru
          _
      $region28: #{tpu_custom_call.1} parent=5 // pred_fallthru
        _
      %p606 = scmp.le.s32.totalorder 2, %s15
      // Predicated region
      $region45: #{tpu_custom_call.1} parent=5 // pred_check
        %p607 = pneg %p606
      $region46: #{tpu_custom_call.1} parent=5 // pred_check_branch
        %609 = sbr.rel (%p607) target = $region48
      $region47: #{tpu_custom_call.1} parent=5 // pred_region
        %s610 = ssub.s32 %s15, 2
        // Predicated region
        $region49: #{tpu_custom_call.1} parent=47 // pred_check
          %p611 = pneg %p107
        $region50: #{tpu_custom_call.1} parent=47 // pred_check_branch
          %613 = sbr.rel (%p611) target = $region52
        $region51: #{tpu_custom_call.1} parent=47 // pred_region
          %s614 = sand.u32 %s92, 1
          %s615 = scalar_lea.sflag [#allocation4], %s614
          %s616 = sand.u32 %s92, 1
          %s617 = smul.addr %s616, 128
          %s618 = scalar_lea.vmem [#allocation7], %s617
          %619 = dma.done %s615, 2048
        $region52: #{tpu_custom_call.1} parent=47 // pred_fallthru
          _
      $region48: #{tpu_custom_call.1} parent=5 // pred_fallthru
        _
    $region6: #{tpu_custom_call.1} parent=1 // loop_footer
      %s19 = sadd.s32 1, %s15
    $region7: #{tpu_custom_call.1} parent=1 // loop_footer_branch
      %14 = sbr.rel target = $region3
    $region8: #{tpu_custom_call.1} parent=1 // loop_exit
      _
    %620 = vsyncpa [#allocation3], 1
    %s621 = scalar_lea.sflag [#allocation3], 1
    %622 = vsyncpa %s621, 1
    %623 = vsyncpa [#allocation6], 1
    %624 = vsyncpa [#allocation4], 1
    %s625 = scalar_lea.sflag [#allocation4], 1
    %626 = vsyncpa %s625, 1

</llo_original>
